<compile_context>
chip_gen: v6e
topology: v6e:2x2x1
jax: 0.10.0
libtpu: 0.0.40
codegen_flags: <defaults>
</compile_context>

<pallas_src>
import jax
import jax.numpy as jnp
from jax.experimental import pallas as pl
from jax.experimental.pallas import tpu as pltpu

LANE = 128            # TPU lane width: feature dims padded to a multiple of this.
SUBLANE = 8           # f32 sublane width: batch tiles padded to a multiple of this.
MAX_BATCH_TILE = 512  # large batch tile amortizes the ~0.35 us/step overhead.


def _round_up(n, m):
    return ((n + m - 1) // m) * m


def mlp_kernel(x_ref, w1_ref, b1_ref, w2_ref, b2_ref, w3_ref, b3_ref, o_ref):
    """One batch tile: fc1 -> ReLU -> fc2 -> ReLU -> fc3 -> sigmoid."""
    x = x_ref[...]                                       # (TB, 128) f32

    # fc1 + ReLU  (bf16 operands on the MXU, f32 accumulation, f32 VPU bias/ReLU)
    h1 = jnp.dot(x.astype(w1_ref.dtype), w1_ref[...],
                 preferred_element_type=jnp.float32)
    h1 = jnp.maximum(h1 + b1_ref[...], 0.0)

    # fc2 + ReLU
    h2 = jnp.dot(h1.astype(w2_ref.dtype), w2_ref[...],
                 preferred_element_type=jnp.float32)
    h2 = jnp.maximum(h2 + b2_ref[...], 0.0)

    # fc3 + sigmoid (full 128-lane store; real class columns sliced in the wrapper)
    logits = jnp.dot(h2.astype(w3_ref.dtype), w3_ref[...],
                     preferred_element_type=jnp.float32) + b3_ref[...]
    o_ref[...] = jax.nn.sigmoid(logits).astype(o_ref.dtype)


def mlp_forward(x, params, *, output_dim, block_b=MAX_BATCH_TILE):
    """x: [B, input_dim] float32.  params: lane-padded [in,out] weights, [1,out] biases."""
    w1, b1, w2, b2, w3, b3 = (params["w1"], params["b1"], params["w2"],
                              params["b2"], params["w3"], params["b3"])
    B, in_dim = x.shape
    k_pad = w1.shape[0]          # padded fc1 contraction dim (128)
    n_pad = w3.shape[1]          # padded fc3 output dim (128)
    hidden = w1.shape[1]

    # Zero-pad the feature dim so the x tile is lane-dense (13 -> 128).
    if in_dim < k_pad:
        x = jnp.pad(x, ((0, 0), (0, k_pad - in_dim)))

    # Batch tile: as large as the batch allows (capped), always a sublane multiple.
    tb = min(block_b, _round_up(B, SUBLANE))
    b_pad = _round_up(B, tb)
    if b_pad != B:
        x = jnp.pad(x, ((0, b_pad - B), (0, 0)))

    grid = (pl.cdiv(b_pad, tb),)

    row_spec = lambda width: pl.BlockSpec((tb, width), lambda i: (i, 0))
    resident = lambda shape: pl.BlockSpec(shape, lambda i: (0, 0))  # loaded once, VMEM-resident

    flops = 2 * b_pad * (k_pad * hidden + hidden * hidden + hidden * n_pad)
    bytes_accessed = (x.size * 4                                  # activations in
                      + (w1.size + w2.size + w3.size) * 2          # bf16 weights
                      + (b1.size + b2.size + b3.size) * 4          # f32 biases
                      + b_pad * n_pad * 4)                         # output

    out_full = pl.pallas_call(
        mlp_kernel,
        out_shape=jax.ShapeDtypeStruct((b_pad, n_pad), jnp.float32),
        grid=grid,
        in_specs=[
            row_spec(k_pad),
            resident(w1.shape), resident(b1.shape),
            resident(w2.shape), resident(b2.shape),
            resident(w3.shape), resident(b3.shape),
        ],
        out_specs=row_spec(n_pad),
        compiler_params=pltpu.CompilerParams(
            dimension_semantics=("parallel",),     # megacore sharding on v7x
            vmem_limit_bytes=32 * 1024 * 1024,     # explicit, v7x-safe VMEM budget
        ),
        cost_estimate=pl.CostEstimate(
            flops=flops,
            transcendentals=b_pad * n_pad,
            bytes_accessed=bytes_accessed),
    )(x, w1, b1, w2, b2, w3, b3)

    return out_full[:B, :output_dim]


def init_params(key, input_dim=13, hidden_dim=128, output_dim=2,
                weight_dtype=jnp.bfloat16):
    """nn.Linear-style U(-1/sqrt(fan_in), +1/sqrt(fan_in)) init, stored [in,out],
    zero-padded to lane-dense shapes, weights cast to bf16 (biases kept f32)."""
    def linear(key, fan_in, fan_out, pad_in, pad_out):
        kw, kb = jax.random.split(key)
        bound = 1.0 / jnp.sqrt(fan_in)
        w = jax.random.uniform(kw, (fan_in, fan_out), jnp.float32, -bound, bound)
        b = jax.random.uniform(kb, (1, fan_out), jnp.float32, -bound, bound)
        w = jnp.pad(w, ((0, pad_in - fan_in), (0, pad_out - fan_out)))
        b = jnp.pad(b, ((0, 0), (0, pad_out - fan_out)))
        return w.astype(weight_dtype), b

    in_pad = _round_up(input_dim, LANE)
    out_pad = _round_up(output_dim, LANE)
    k1, k2, k3 = jax.random.split(key, 3)
    w1, b1 = linear(k1, input_dim, hidden_dim, in_pad, hidden_dim)
    w2, b2 = linear(k2, hidden_dim, hidden_dim, hidden_dim, hidden_dim)
    w3, b3 = linear(k3, hidden_dim, output_dim, hidden_dim, out_pad)
    return {"w1": w1, "b1": b1, "w2": w2, "b2": b2, "w3": w3, "b3": b3}


def ref_forward(x, params, output_dim):
    """Pure-JAX reference performing the identical padded / bf16-weight computation."""
    w1, b1, w2, b2, w3, b3 = (params["w1"], params["b1"], params["w2"],
                              params["b2"], params["w3"], params["b3"])
    x = jnp.pad(x, ((0, 0), (0, w1.shape[0] - x.shape[1])))
    h1 = jnp.maximum(jnp.dot(x.astype(w1.dtype), w1,
                             preferred_element_type=jnp.float32) + b1, 0.0)
    h2 = jnp.maximum(jnp.dot(h1.astype(w2.dtype), w2,
                             preferred_element_type=jnp.float32) + b2, 0.0)
    logits = jnp.dot(h2.astype(w3.dtype), w3,
                     preferred_element_type=jnp.float32) + b3
    return jax.nn.sigmoid(logits)[:, :output_dim]


if __name__ == "__main__":
    key = jax.random.PRNGKey(0)
    kx, kp = jax.random.split(key)

    # CONFIG.BATCH_SIZE=96, N_MFCC=13, hidden=128, N_CLASSES=2
    B, INPUT_DIM, HIDDEN_DIM, OUTPUT_DIM = 96, 13, 128, 2
    x = jax.random.normal(kx, (B, INPUT_DIM), jnp.float32)
    params = init_params(kp, INPUT_DIM, HIDDEN_DIM, OUTPUT_DIM)

    out = mlp_forward(x, params, output_dim=OUTPUT_DIM)
    jax.block_until_ready(out)

    expected = ref_forward(x, params, OUTPUT_DIM)
    assert out.shape == (B, OUTPUT_DIM), out.shape
    max_err = float(jnp.max(jnp.abs(out - expected)))
    assert jnp.allclose(out, expected, atol=1e-3, rtol=1e-3), max_err

    print("KERNEL_OK")
</pallas_src>

<mosaic_0001>
module attributes {stable_mosaic.version = 11 : i64} {
  func.func @mlp_kernel(%arg0: i32, %arg1: memref<96x128xf32, #tpu.memory_space<vmem>>, %arg2: memref<128x128xbf16, #tpu.memory_space<vmem>>, %arg3: memref<1x128xf32, #tpu.memory_space<vmem>>, %arg4: memref<128x128xbf16, #tpu.memory_space<vmem>>, %arg5: memref<1x128xf32, #tpu.memory_space<vmem>>, %arg6: memref<128x128xbf16, #tpu.memory_space<vmem>>, %arg7: memref<1x128xf32, #tpu.memory_space<vmem>>, %arg8: memref<96x128xf32, #tpu.memory_space<vmem>>) attributes {dimension_semantics = [#tpu.dimension_semantics<parallel>], iteration_bounds = array<i64: 1>, scalar_prefetch = 0 : i64, scratch_operands = 0 : i64, tpu.core_type = #tpu.core_type<tc>, window_params = [{transform_indices = @transform_0, window_bounds = array<i64: 96, 128>}, {pipeline_mode = #tpu.pipeline_mode<synchronous>, transform_indices = @transform_1, window_bounds = array<i64: 128, 128>}, {pipeline_mode = #tpu.pipeline_mode<synchronous>, transform_indices = @transform_2, window_bounds = array<i64: 1, 128>}, {pipeline_mode = #tpu.pipeline_mode<synchronous>, transform_indices = @transform_3, window_bounds = array<i64: 128, 128>}, {pipeline_mode = #tpu.pipeline_mode<synchronous>, transform_indices = @transform_4, window_bounds = array<i64: 1, 128>}, {pipeline_mode = #tpu.pipeline_mode<synchronous>, transform_indices = @transform_5, window_bounds = array<i64: 128, 128>}, {pipeline_mode = #tpu.pipeline_mode<synchronous>, transform_indices = @transform_6, window_bounds = array<i64: 1, 128>}, {transform_indices = @transform_7, window_bounds = array<i64: 96, 128>}]} {
    %c0 = arith.constant 0 : index
    %c0_0 = arith.constant 0 : index
    %0 = vector.load %arg1[%c0, %c0_0] : memref<96x128xf32, #tpu.memory_space<vmem>>, vector<96x128xf32>
    %1 = arith.truncf %0 : vector<96x128xf32> to vector<96x128xbf16>
    %c0_1 = arith.constant 0 : index
    %c0_2 = arith.constant 0 : index
    %2 = vector.load %arg2[%c0_1, %c0_2] : memref<128x128xbf16, #tpu.memory_space<vmem>>, vector<128x128xbf16>
    %cst = arith.constant dense<0.000000e+00> : vector<96x128xf32>
    %3 = tpu.matmul %1, %2, %cst {dimension_numbers = #tpu.dot_dimension_numbers<[1], [0], [0], [1], [0, 0, 1, 1], [], []>} : vector<96x128xbf16>, vector<128x128xbf16>, vector<96x128xf32> -> vector<96x128xf32>
    %c0_3 = arith.constant 0 : index
    %c0_4 = arith.constant 0 : index
    %4 = vector.load %arg3[%c0_3, %c0_4] : memref<1x128xf32, #tpu.memory_space<vmem>>, vector<1x128xf32>
    %5 = vector.broadcast %4 : vector<1x128xf32> to vector<96x128xf32>
    %6 = arith.addf %3, %5 : vector<96x128xf32>
    %cst_5 = arith.constant 0.000000e+00 : f32
    %7 = vector.broadcast %cst_5 : f32 to vector<96x128xf32>
    %8 = arith.maximumf %6, %7 : vector<96x128xf32>
    %9 = arith.truncf %8 : vector<96x128xf32> to vector<96x128xbf16>
    %c0_6 = arith.constant 0 : index
    %c0_7 = arith.constant 0 : index
    %10 = vector.load %arg4[%c0_6, %c0_7] : memref<128x128xbf16, #tpu.memory_space<vmem>>, vector<128x128xbf16>
    %cst_8 = arith.constant dense<0.000000e+00> : vector<96x128xf32>
    %11 = tpu.matmul %9, %10, %cst_8 {dimension_numbers = #tpu.dot_dimension_numbers<[1], [0], [0], [1], [0, 0, 1, 1], [], []>} : vector<96x128xbf16>, vector<128x128xbf16>, vector<96x128xf32> -> vector<96x128xf32>
    %c0_9 = arith.constant 0 : index
    %c0_10 = arith.constant 0 : index
    %12 = vector.load %arg5[%c0_9, %c0_10] : memref<1x128xf32, #tpu.memory_space<vmem>>, vector<1x128xf32>
    %13 = vector.broadcast %12 : vector<1x128xf32> to vector<96x128xf32>
    %14 = arith.addf %11, %13 : vector<96x128xf32>
    %cst_11 = arith.constant 0.000000e+00 : f32
    %15 = vector.broadcast %cst_11 : f32 to vector<96x128xf32>
    %16 = arith.maximumf %14, %15 : vector<96x128xf32>
    %17 = arith.truncf %16 : vector<96x128xf32> to vector<96x128xbf16>
    %c0_12 = arith.constant 0 : index
    %c0_13 = arith.constant 0 : index
    %18 = vector.load %arg6[%c0_12, %c0_13] : memref<128x128xbf16, #tpu.memory_space<vmem>>, vector<128x128xbf16>
    %cst_14 = arith.constant dense<0.000000e+00> : vector<96x128xf32>
    %19 = tpu.matmul %17, %18, %cst_14 {dimension_numbers = #tpu.dot_dimension_numbers<[1], [0], [0], [1], [0, 0, 1, 1], [], []>} : vector<96x128xbf16>, vector<128x128xbf16>, vector<96x128xf32> -> vector<96x128xf32>
    %c0_15 = arith.constant 0 : index
    %c0_16 = arith.constant 0 : index
    %20 = vector.load %arg7[%c0_15, %c0_16] : memref<1x128xf32, #tpu.memory_space<vmem>>, vector<1x128xf32>
    %21 = vector.broadcast %20 : vector<1x128xf32> to vector<96x128xf32>
    %22 = arith.addf %19, %21 : vector<96x128xf32>
    %23 = arith.negf %22 : vector<96x128xf32>
    %24 = math.exp %23 : vector<96x128xf32>
    %cst_17 = arith.constant 1.000000e+00 : f32
    %25 = vector.broadcast %cst_17 : f32 to vector<96x128xf32>
    %26 = arith.addf %25, %24 : vector<96x128xf32>
    %27 = arith.divf %25, %26 : vector<96x128xf32>
    %c0_18 = arith.constant 0 : index
    %c0_19 = arith.constant 0 : index
    %28 = vector.load %arg8[%c0_18, %c0_19] : memref<96x128xf32, #tpu.memory_space<vmem>>, vector<96x128xf32>
    tpu.vector_store %arg8[%c0_18, %c0_19], %27 {strides = array<i32>} : memref<96x128xf32, #tpu.memory_space<vmem>>, vector<96x128xf32>,
    return
  }
  func.func @transform_0(%arg0: i32) -> (i32, i32) {
    %c0_i32 = arith.constant 0 : i32
    %c0_i32_0 = arith.constant 0 : i32
    return %arg0, %c0_i32 : i32, i32
  }
  func.func @transform_1(%arg0: i32) -> (i32, i32) {
    %c0_i32 = arith.constant 0 : i32
    %c0_i32_0 = arith.constant 0 : i32
    %c0_i32_1 = arith.constant 0 : i32
    return %c0_i32, %c0_i32_0 : i32, i32
  }
  func.func @transform_2(%arg0: i32) -> (i32, i32) {
    %c0_i32 = arith.constant 0 : i32
    %c0_i32_0 = arith.constant 0 : i32
    %c0_i32_1 = arith.constant 0 : i32
    return %c0_i32, %c0_i32_0 : i32, i32
  }
  func.func @transform_3(%arg0: i32) -> (i32, i32) {
    %c0_i32 = arith.constant 0 : i32
    %c0_i32_0 = arith.constant 0 : i32
    %c0_i32_1 = arith.constant 0 : i32
    return %c0_i32, %c0_i32_0 : i32, i32
  }
  func.func @transform_4(%arg0: i32) -> (i32, i32) {
    %c0_i32 = arith.constant 0 : i32
    %c0_i32_0 = arith.constant 0 : i32
    %c0_i32_1 = arith.constant 0 : i32
    return %c0_i32, %c0_i32_0 : i32, i32
  }
  func.func @transform_5(%arg0: i32) -> (i32, i32) {
    %c0_i32 = arith.constant 0 : i32
    %c0_i32_0 = arith.constant 0 : i32
    %c0_i32_1 = arith.constant 0 : i32
    return %c0_i32, %c0_i32_0 : i32, i32
  }
  func.func @transform_6(%arg0: i32) -> (i32, i32) {
    %c0_i32 = arith.constant 0 : i32
    %c0_i32_0 = arith.constant 0 : i32
    %c0_i32_1 = arith.constant 0 : i32
    return %c0_i32, %c0_i32_0 : i32, i32
  }
  func.func @transform_7(%arg0: i32) -> (i32, i32) {
    %c0_i32 = arith.constant 0 : i32
    %c0_i32_0 = arith.constant 0 : i32
    return %arg0, %c0_i32 : i32, i32
  }
}

</mosaic_0001>

<llo_original>
// kernel: tpu_custom_call.1
$region0: #{tpu_custom_call.1}
  #allocation0 [shape = 'u32[]', space=smem, size = 0x4, offset = 0x4, fixed_abs, tag = 'smem constant byte address 0x4 - core index']
  #allocation1 [shape = 'u32[144,128]{1,0:T(1,128)}', space=vmem, size = 0x12000, scoped, tag = 'internal scratch']
  %s0 = inlined_call_operand.hbm [shape: f32[96,128], index: 0, kind: input, shape index: {}]
  %s1 = inlined_call_operand.hbm [shape: bf16[128,128], index: 1, kind: input, shape index: {}]
  %s2 = inlined_call_operand.vmem [shape: f32[1,128], index: 2, kind: input, shape index: {}]
  %s3 = inlined_call_operand.hbm [shape: bf16[128,128], index: 3, kind: input, shape index: {}]
  %s4 = inlined_call_operand.vmem [shape: f32[1,128], index: 4, kind: input, shape index: {}]
  %s5 = inlined_call_operand.hbm [shape: bf16[128,128], index: 5, kind: input, shape index: {}]
  %s6 = inlined_call_operand.vmem [shape: f32[1,128], index: 6, kind: input, shape index: {}]
  %s7 = inlined_call_operand.hbm [shape: f32[96,128], index: 7, kind: output, shape index: {}]
  %s8 = sld [smem:[#allocation0]]
  $region54: #{tpu_custom_call.1} parent=0
    _
  %s10 = ssub.s32 1, %s8
  %s11 = scalar_select 0, %s10, %s8
  $region1: #{tpu_custom_call.1} parent=0
    #allocation2 [shape = 'u8[49152]{0}', space=vmem, size = 0xc000, scoped, tag = 'input window, operand 0, single buffered']
    #allocation3 [shape = 's32[1]{0}', space=sflag, size = 0x4, scoped, tag = 'scoped memory for tpu_custom_call.1']
    #allocation4 [shape = 's32[1]{0}', space=sflag, size = 0x4, scoped, tag = 'scoped memory for tpu_custom_call.1']
    #allocation5 [shape = 'u8[32768]{0}', space=vmem, size = 0x8000, scoped, tag = 'input window, operand 1, single buffered']
    #allocation6 [shape = 's32[1]{0}', space=sflag, size = 0x4, scoped, tag = 'scoped memory for tpu_custom_call.1']
    #allocation7 [shape = 'u8[32768]{0}', space=vmem, size = 0x8000, scoped, tag = 'input window, operand 3, single buffered']
    #allocation8 [shape = 'u8[32768]{0}', space=vmem, size = 0x8000, scoped, tag = 'input window, operand 5, single buffered']
    #allocation9 [shape = 's32[1]{0}', space=sflag, size = 0x4, scoped, tag = 'scoped memory for tpu_custom_call.1']
    #allocation10 [shape = 'u8[49152]{0}', space=vmem, size = 0xc000, scoped, tag = 'output window, operand 0, single buffered']
    %12 = vsyncpa [#allocation3], 0
    %13 = vsyncpa [#allocation6], 0
    %14 = vsyncpa [#allocation9], 0
    %15 = vsyncpa [#allocation4], 0
    // Predicated region
    $region2: #{tpu_custom_call.1} parent=1 // pred_check
      _
    $region3: #{tpu_custom_call.1} parent=1 // pred_check_branch
      %17 = sbr.rel (0) target = $region5
    $region4: #{tpu_custom_call.1} parent=1 // pred_region
      %s19 = ssub.s32 1536, 1536
      %20 = vsyncadd [#allocation3], %s19
      %s21 = sshll.u32 [#allocation2], 4
      %s22 = int_to_ptr.vmem [resolvable:$true] %s21
      %27 = dma.hbm_to_vmem [thread:$0]  %s0, 1536, %s22, [#allocation3], 128, 128, 8
    $region5: #{tpu_custom_call.1} parent=1 // pred_fallthru
      _
    // Predicated region
    $region6: #{tpu_custom_call.1} parent=1 // pred_check
      _
    $region7: #{tpu_custom_call.1} parent=1 // pred_check_branch
      %29 = sbr.rel (0) target = $region9
    $region8: #{tpu_custom_call.1} parent=1 // pred_region
      %s31 = ssub.s32 1024, 1024
      %32 = vsyncadd [#allocation6], %s31
      %s33 = sshll.u32 [#allocation5], 4
      %s34 = int_to_ptr.vmem [resolvable:$true] %s33
      %39 = dma.hbm_to_vmem [thread:$0]  %s1, 1024, %s34, [#allocation6], 64, 64, 4
    $region9: #{tpu_custom_call.1} parent=1 // pred_fallthru
      _
    // Predicated region
    $region10: #{tpu_custom_call.1} parent=1 // pred_check
      _
    $region11: #{tpu_custom_call.1} parent=1 // pred_check_branch
      %41 = sbr.rel (0) target = $region13
    $region12: #{tpu_custom_call.1} parent=1 // pred_region
      _
    $region13: #{tpu_custom_call.1} parent=1 // pred_fallthru
      _
    // Predicated region
    $region14: #{tpu_custom_call.1} parent=1 // pred_check
      _
    $region15: #{tpu_custom_call.1} parent=1 // pred_check_branch
      %43 = sbr.rel (0) target = $region17
    $region16: #{tpu_custom_call.1} parent=1 // pred_region
      %s45 = ssub.s32 1024, 1024
      %46 = vsyncadd [#allocation6], %s45
      %s47 = sshll.u32 [#allocation7], 4
      %s48 = int_to_ptr.vmem [resolvable:$true] %s47
      %53 = dma.hbm_to_vmem [thread:$0]  %s3, 1024, %s48, [#allocation6], 64, 64, 4
    $region17: #{tpu_custom_call.1} parent=1 // pred_fallthru
      _
    // Predicated region
    $region18: #{tpu_custom_call.1} parent=1 // pred_check
      _
    $region19: #{tpu_custom_call.1} parent=1 // pred_check_branch
      %55 = sbr.rel (0) target = $region21
    $region20: #{tpu_custom_call.1} parent=1 // pred_region
      _
    $region21: #{tpu_custom_call.1} parent=1 // pred_fallthru
      _
    // Predicated region
    $region22: #{tpu_custom_call.1} parent=1 // pred_check
      _
    $region23: #{tpu_custom_call.1} parent=1 // pred_check_branch
      %57 = sbr.rel (0) target = $region25
    $region24: #{tpu_custom_call.1} parent=1 // pred_region
      %s59 = ssub.s32 1024, 1024
      %60 = vsyncadd [#allocation9], %s59
      %s61 = sshll.u32 [#allocation8], 4
      %s62 = int_to_ptr.vmem [resolvable:$true] %s61
      %67 = dma.hbm_to_vmem [thread:$0]  %s5, 1024, %s62, [#allocation9], 64, 64, 4
    $region25: #{tpu_custom_call.1} parent=1 // pred_fallthru
      _
    // Predicated region
    $region26: #{tpu_custom_call.1} parent=1 // pred_check
      _
    $region27: #{tpu_custom_call.1} parent=1 // pred_check_branch
      %69 = sbr.rel (0) target = $region29
    $region28: #{tpu_custom_call.1} parent=1 // pred_region
      _
    $region29: #{tpu_custom_call.1} parent=1 // pred_fallthru
      _
    // Predicated region
    $region30: #{tpu_custom_call.1} parent=1 // pred_check
      _
    $region31: #{tpu_custom_call.1} parent=1 // pred_check_branch
      %71 = sbr.rel (0) target = $region33
    $region32: #{tpu_custom_call.1} parent=1 // pred_region
      %72 = dma.done [#allocation3], 1536
    $region33: #{tpu_custom_call.1} parent=1 // pred_fallthru
      _
    // Predicated region
    $region34: #{tpu_custom_call.1} parent=1 // pred_check
      _
    $region35: #{tpu_custom_call.1} parent=1 // pred_check_branch
      %74 = sbr.rel (0) target = $region37
    $region36: #{tpu_custom_call.1} parent=1 // pred_region
      %75 = dma.done [#allocation6], 1024
    $region37: #{tpu_custom_call.1} parent=1 // pred_fallthru
      _
    // Predicated region
    $region38: #{tpu_custom_call.1} parent=1 // pred_check
      _
    $region39: #{tpu_custom_call.1} parent=1 // pred_check_branch
      %77 = sbr.rel (0) target = $region41
    $region40: #{tpu_custom_call.1} parent=1 // pred_region
      %78 = dma.done [#allocation6], 1024
    $region41: #{tpu_custom_call.1} parent=1 // pred_fallthru
      _
    // Predicated region
    $region42: #{tpu_custom_call.1} parent=1 // pred_check
      _
    $region43: #{tpu_custom_call.1} parent=1 // pred_check_branch
      %80 = sbr.rel (0) target = $region45
    $region44: #{tpu_custom_call.1} parent=1 // pred_region
      %81 = dma.done [#allocation9], 1024
    $region45: #{tpu_custom_call.1} parent=1 // pred_fallthru
      _
    %v83 = vld [vmem:[#allocation2] sm:$0xff]
    %v84 = vld [vmem:[#allocation2 + $0x8] sm:$0xff]
    %v85 = vld [vmem:[#allocation2 + $0x10] sm:$0xff]
    %v86 = vld [vmem:[#allocation2 + $0x18] sm:$0xff]
    %v87 = vld [vmem:[#allocation2 + $0x20] sm:$0xff]
    %v88 = vld [vmem:[#allocation2 + $0x28] sm:$0xff]
    %v89 = vld [vmem:[#allocation2 + $0x30] sm:$0xff]
    %v90 = vld [vmem:[#allocation2 + $0x38] sm:$0xff]
    %v91 = vld [vmem:[#allocation2 + $0x40] sm:$0xff]
    %v92 = vld [vmem:[#allocation2 + $0x48] sm:$0xff]
    %v93 = vld [vmem:[#allocation2 + $0x50] sm:$0xff]
    %v94 = vld [vmem:[#allocation2 + $0x58] sm:$0xff]
    %v95 = vpack.c.bf16 %v84, %v83
    %v96 = vpack.c.bf16 %v86, %v85
    %v97 = vpack.c.bf16 %v88, %v87
    %v98 = vpack.c.bf16 %v90, %v89
    %v99 = vpack.c.bf16 %v92, %v91
    %v100 = vpack.c.bf16 %v94, %v93
    %v101 = vld [vmem:[#allocation5] sm:$0xf]
    %v102 = vld [vmem:[#allocation5 + $0x4] sm:$0xf]
    %v103 = vld [vmem:[#allocation5 + $0x8] sm:$0xf]
    %v104 = vld [vmem:[#allocation5 + $0xc] sm:$0xf]
    %v105 = vld [vmem:[#allocation5 + $0x10] sm:$0xf]
    %v106 = vld [vmem:[#allocation5 + $0x14] sm:$0xf]
    %v107 = vld [vmem:[#allocation5 + $0x18] sm:$0xf]
    %v108 = vld [vmem:[#allocation5 + $0x1c] sm:$0xf]
    %v109 = vld [vmem:[#allocation5 + $0x20] sm:$0xf]
    %v110 = vld [vmem:[#allocation5 + $0x24] sm:$0xf]
    %v111 = vld [vmem:[#allocation5 + $0x28] sm:$0xf]
    %v112 = vld [vmem:[#allocation5 + $0x2c] sm:$0xf]
    %v113 = vld [vmem:[#allocation5 + $0x30] sm:$0xf]
    %v114 = vld [vmem:[#allocation5 + $0x34] sm:$0xf]
    %v115 = vld [vmem:[#allocation5 + $0x38] sm:$0xf]
    %v116 = vld [vmem:[#allocation5 + $0x3c] sm:$0xf]
    %v117 = vld [vmem:[%s2] sm:$0x1]
    %v119 = vlaneseq
    %v120 = vshrl.u32 %v119, 7
    %v121 = vsub.s32 0, %v120
    %v122 = vrot.slane %v117, %v121
    %v140 = vunpack.c.l.b16 %v101
    %v141 = vunpack.c.l.b16 %v102
    %v142 = vunpack.c.l.b16 %v103
    %v143 = vunpack.c.l.b16 %v104
    %v144 = vunpack.c.l.b16 %v105
    %v145 = vunpack.c.l.b16 %v106
    %v146 = vunpack.c.l.b16 %v107
    %v147 = vunpack.c.l.b16 %v108
    %v148 = vunpack.c.l.b16 %v109
    %v149 = vunpack.c.l.b16 %v110
    %v150 = vunpack.c.l.b16 %v111
    %v151 = vunpack.c.l.b16 %v112
    %v152 = vunpack.c.l.b16 %v113
    %v153 = vunpack.c.l.b16 %v114
    %v154 = vunpack.c.l.b16 %v115
    %v155 = vunpack.c.l.b16 %v116
    %v156 = vpack.c.b16 %v141, %v140
    %v157 = vpack.c.b16 %v143, %v142
    %v158 = vpack.c.b16 %v145, %v144
    %v159 = vpack.c.b16 %v147, %v146
    %v160 = vpack.c.b16 %v149, %v148
    %v161 = vpack.c.b16 %v151, %v150
    %v162 = vpack.c.b16 %v153, %v152
    %v163 = vpack.c.b16 %v155, %v154
    %172 = vmatprep.subr.bf16.mxu0 0
    %173 = vmatpush1.bf16.msra.mxu0 %v163
    %174 = vmatprep.subr.bf16.mxu0 0
    %175 = vmatpush1.bf16.msra.mxu0 %v162
    %176 = vmatprep.subr.bf16.mxu0 0
    %177 = vmatpush1.bf16.msra.mxu0 %v161
    %178 = vmatprep.subr.bf16.mxu0 0
    %179 = vmatpush1.bf16.msra.mxu0 %v160
    %180 = vmatprep.subr.bf16.mxu0 0
    %181 = vmatpush1.bf16.msra.mxu0 %v159
    %182 = vmatprep.subr.bf16.mxu0 0
    %183 = vmatpush1.bf16.msra.mxu0 %v158
    %184 = vmatprep.subr.bf16.mxu0 0
    %185 = vmatpush1.bf16.msra.mxu0 %v157
    %186 = vmatprep.subr.bf16.mxu0 0
    %187 = vmatpush1.bf16.msra.mxu0 %v156
    %188 = vmatprep.subr.bf16.mxu0 0
    %189 = vmatpush2.bf16.msra.mxu0 0
    %190 = vmatprep.subr.bf16.mxu0 0
    %191 = vmatpush2.bf16.msra.mxu0 0
    %192 = vmatprep.subr.bf16.mxu0 0
    %193 = vmatpush2.bf16.msra.mxu0 0
    %194 = vmatprep.subr.bf16.mxu0 0
    %195 = vmatpush2.bf16.msra.mxu0 0
    %196 = vmatprep.subr.bf16.mxu0 0
    %197 = vmatpush2.bf16.msra.mxu0 0
    %198 = vmatprep.subr.bf16.mxu0 0
    %199 = vmatpush2.bf16.msra.mxu0 0
    %200 = vmatprep.subr.bf16.mxu0 0
    %201 = vmatpush2.bf16.msra.mxu0 0
    %202 = vmatprep.subr.bf16.mxu0 0
    %203 = vmatpush2.bf16.msra.mxu0 0
    %204 = vmatprep.mubr.bf16.mxu0 0
    %205 = vmatmul.mubr.bf16.gmra.mxu0 %v95
    %v206 = vpop.f32.mrf.mxu0
    %v207 = vadd.f32 %v122, %v206
    %v208 = vpop.f32.mrf.mxu0
    %v209 = vpop.f32.mrf.mxu0
    %v210 = vadd.f32 %v122, %v209
    %v211 = vpop.f32.mrf.mxu0
    %212 = vmatprep.mubr.bf16.mxu0 0
    %213 = vmatmul.mubr.bf16.gmra.mxu0 %v96
    %v214 = vpop.f32.mrf.mxu0
    %v215 = vadd.f32 %v122, %v214
    %v216 = vpop.f32.mrf.mxu0
    %v217 = vpop.f32.mrf.mxu0
    %v218 = vadd.f32 %v122, %v217
    %v219 = vpop.f32.mrf.mxu0
    %220 = vmatprep.mubr.bf16.mxu0 0
    %221 = vmatmul.mubr.bf16.gmra.mxu0 %v97
    %v222 = vpop.f32.mrf.mxu0
    %v223 = vadd.f32 %v122, %v222
    %v224 = vpop.f32.mrf.mxu0
    %v225 = vpop.f32.mrf.mxu0
    %v226 = vadd.f32 %v122, %v225
    %v227 = vpop.f32.mrf.mxu0
    %228 = vmatprep.mubr.bf16.mxu0 0
    %229 = vmatmul.mubr.bf16.gmra.mxu0 %v98
    %v230 = vpop.f32.mrf.mxu0
    %v231 = vadd.f32 %v122, %v230
    %v232 = vpop.f32.mrf.mxu0
    %v233 = vpop.f32.mrf.mxu0
    %v234 = vadd.f32 %v122, %v233
    %v235 = vpop.f32.mrf.mxu0
    %236 = vmatprep.mubr.bf16.mxu0 0
    %237 = vmatmul.mubr.bf16.gmra.mxu0 %v99
    %v238 = vpop.f32.mrf.mxu0
    %v239 = vadd.f32 %v122, %v238
    %v240 = vpop.f32.mrf.mxu0
    %v241 = vpop.f32.mrf.mxu0
    %v242 = vadd.f32 %v122, %v241
    %v243 = vpop.f32.mrf.mxu0
    %244 = vmatprep.mubr.bf16.mxu0 0
    %245 = vmatmul.mubr.bf16.gmra.mxu0 %v100
    %v246 = vpop.f32.mrf.mxu0
    %v247 = vadd.f32 %v122, %v246
    %v248 = vpop.f32.mrf.mxu0
    %v249 = vpop.f32.mrf.mxu0
    %v250 = vadd.f32 %v122, %v249
    %v251 = vpop.f32.mrf.mxu0
    %252 = vdwg.mxu0
    %v253 = vmax.f32 %v207, 0.0
    %v254 = vmax.f32 %v210, 0.0
    %v255 = vmax.f32 %v215, 0.0
    %v256 = vmax.f32 %v218, 0.0
    %v257 = vmax.f32 %v223, 0.0
    %v258 = vmax.f32 %v226, 0.0
    %v259 = vmax.f32 %v231, 0.0
    %v260 = vmax.f32 %v234, 0.0
    %v261 = vmax.f32 %v239, 0.0
    %v262 = vmax.f32 %v242, 0.0
    %v263 = vmax.f32 %v247, 0.0
    %v264 = vmax.f32 %v250, 0.0
    %v265 = vpack.c.bf16 %v254, %v253
    %v266 = vpack.c.bf16 %v256, %v255
    %v267 = vpack.c.bf16 %v258, %v257
    %v268 = vpack.c.bf16 %v260, %v259
    %v269 = vpack.c.bf16 %v262, %v261
    %v270 = vpack.c.bf16 %v264, %v263
    %v271 = vld [vmem:[#allocation7] sm:$0xf]
    %v272 = vld [vmem:[#allocation7 + $0x4] sm:$0xf]
    %v273 = vld [vmem:[#allocation7 + $0x8] sm:$0xf]
    %v274 = vld [vmem:[#allocation7 + $0xc] sm:$0xf]
    %v275 = vld [vmem:[#allocation7 + $0x10] sm:$0xf]
    %v276 = vld [vmem:[#allocation7 + $0x14] sm:$0xf]
    %v277 = vld [vmem:[#allocation7 + $0x18] sm:$0xf]
    %v278 = vld [vmem:[#allocation7 + $0x1c] sm:$0xf]
    %v279 = vld [vmem:[#allocation7 + $0x20] sm:$0xf]
    %v280 = vld [vmem:[#allocation7 + $0x24] sm:$0xf]
    %v281 = vld [vmem:[#allocation7 + $0x28] sm:$0xf]
    %v282 = vld [vmem:[#allocation7 + $0x2c] sm:$0xf]
    %v283 = vld [vmem:[#allocation7 + $0x30] sm:$0xf]
    %v284 = vld [vmem:[#allocation7 + $0x34] sm:$0xf]
    %v285 = vld [vmem:[#allocation7 + $0x38] sm:$0xf]
    %v286 = vld [vmem:[#allocation7 + $0x3c] sm:$0xf]
    %v287 = vld [vmem:[%s4] sm:$0x1]
    %v289 = vlaneseq
    %v290 = vshrl.u32 %v289, 7
    %v291 = vsub.s32 0, %v290
    %v292 = vrot.slane %v287, %v291
    %v310 = vunpack.c.l.b16 %v271
    %v311 = vunpack.c.l.b16 %v272
    %v312 = vunpack.c.l.b16 %v273
    %v313 = vunpack.c.l.b16 %v274
    %v314 = vunpack.c.l.b16 %v275
    %v315 = vunpack.c.l.b16 %v276
    %v316 = vunpack.c.l.b16 %v277
    %v317 = vunpack.c.l.b16 %v278
    %v318 = vunpack.c.l.b16 %v279
    %v319 = vunpack.c.l.b16 %v280
    %v320 = vunpack.c.l.b16 %v281
    %v321 = vunpack.c.l.b16 %v282
    %v322 = vunpack.c.l.b16 %v283
    %v323 = vunpack.c.l.b16 %v284
    %v324 = vunpack.c.l.b16 %v285
    %v325 = vunpack.c.l.b16 %v286
    %v326 = vpack.c.b16 %v311, %v310
    %v327 = vpack.c.b16 %v313, %v312
    %v328 = vpack.c.b16 %v315, %v314
    %v329 = vpack.c.b16 %v317, %v316
    %v330 = vpack.c.b16 %v319, %v318
    %v331 = vpack.c.b16 %v321, %v320
    %v332 = vpack.c.b16 %v323, %v322
    %v333 = vpack.c.b16 %v325, %v324
    %342 = vmatprep.subr.bf16.mxu0 0
    %343 = vmatpush1.bf16.msra.mxu0 %v333
    %344 = vmatprep.subr.bf16.mxu0 0
    %345 = vmatpush1.bf16.msra.mxu0 %v332
    %346 = vmatprep.subr.bf16.mxu0 0
    %347 = vmatpush1.bf16.msra.mxu0 %v331
    %348 = vmatprep.subr.bf16.mxu0 0
    %349 = vmatpush1.bf16.msra.mxu0 %v330
    %350 = vmatprep.subr.bf16.mxu0 0
    %351 = vmatpush1.bf16.msra.mxu0 %v329
    %352 = vmatprep.subr.bf16.mxu0 0
    %353 = vmatpush1.bf16.msra.mxu0 %v328
    %354 = vmatprep.subr.bf16.mxu0 0
    %355 = vmatpush1.bf16.msra.mxu0 %v327
    %356 = vmatprep.subr.bf16.mxu0 0
    %357 = vmatpush1.bf16.msra.mxu0 %v326
    %358 = vmatprep.subr.bf16.mxu0 0
    %359 = vmatpush2.bf16.msra.mxu0 0
    %360 = vmatprep.subr.bf16.mxu0 0
    %361 = vmatpush2.bf16.msra.mxu0 0
    %362 = vmatprep.subr.bf16.mxu0 0
    %363 = vmatpush2.bf16.msra.mxu0 0
    %364 = vmatprep.subr.bf16.mxu0 0
    %365 = vmatpush2.bf16.msra.mxu0 0
    %366 = vmatprep.subr.bf16.mxu0 0
    %367 = vmatpush2.bf16.msra.mxu0 0
    %368 = vmatprep.subr.bf16.mxu0 0
    %369 = vmatpush2.bf16.msra.mxu0 0
    %370 = vmatprep.subr.bf16.mxu0 0
    %371 = vmatpush2.bf16.msra.mxu0 0
    %372 = vmatprep.subr.bf16.mxu0 0
    %373 = vmatpush2.bf16.msra.mxu0 0
    %374 = vmatprep.mubr.bf16.mxu0 0
    %375 = vmatmul.mubr.bf16.gmra.mxu0 %v265
    %v376 = vpop.f32.mrf.mxu0
    %v377 = vadd.f32 %v292, %v376
    %v378 = vpop.f32.mrf.mxu0
    %v379 = vpop.f32.mrf.mxu0
    %v380 = vadd.f32 %v292, %v379
    %v381 = vpop.f32.mrf.mxu0
    %382 = vmatprep.mubr.bf16.mxu0 0
    %383 = vmatmul.mubr.bf16.gmra.mxu0 %v266
    %v384 = vpop.f32.mrf.mxu0
    %v385 = vadd.f32 %v292, %v384
    %v386 = vpop.f32.mrf.mxu0
    %v387 = vpop.f32.mrf.mxu0
    %v388 = vadd.f32 %v292, %v387
    %v389 = vpop.f32.mrf.mxu0
    %390 = vmatprep.mubr.bf16.mxu0 0
    %391 = vmatmul.mubr.bf16.gmra.mxu0 %v267
    %v392 = vpop.f32.mrf.mxu0
    %v393 = vadd.f32 %v292, %v392
    %v394 = vpop.f32.mrf.mxu0
    %v395 = vpop.f32.mrf.mxu0
    %v396 = vadd.f32 %v292, %v395
    %v397 = vpop.f32.mrf.mxu0
    %398 = vmatprep.mubr.bf16.mxu0 0
    %399 = vmatmul.mubr.bf16.gmra.mxu0 %v268
    %v400 = vpop.f32.mrf.mxu0
    %v401 = vadd.f32 %v292, %v400
    %v402 = vpop.f32.mrf.mxu0
    %v403 = vpop.f32.mrf.mxu0
    %v404 = vadd.f32 %v292, %v403
    %v405 = vpop.f32.mrf.mxu0
    %406 = vmatprep.mubr.bf16.mxu0 0
    %407 = vmatmul.mubr.bf16.gmra.mxu0 %v269
    %v408 = vpop.f32.mrf.mxu0
    %v409 = vadd.f32 %v292, %v408
    %v410 = vpop.f32.mrf.mxu0
    %v411 = vpop.f32.mrf.mxu0
    %v412 = vadd.f32 %v292, %v411
    %v413 = vpop.f32.mrf.mxu0
    %414 = vmatprep.mubr.bf16.mxu0 0
    %415 = vmatmul.mubr.bf16.gmra.mxu0 %v270
    %v416 = vpop.f32.mrf.mxu0
    %v417 = vadd.f32 %v292, %v416
    %v418 = vpop.f32.mrf.mxu0
    %v419 = vpop.f32.mrf.mxu0
    %v420 = vadd.f32 %v292, %v419
    %v421 = vpop.f32.mrf.mxu0
    %422 = vdwg.mxu0
    %v423 = vmax.f32 %v377, 0.0
    %v424 = vmax.f32 %v380, 0.0
    %v425 = vmax.f32 %v385, 0.0
    %v426 = vmax.f32 %v388, 0.0
    %v427 = vmax.f32 %v393, 0.0
    %v428 = vmax.f32 %v396, 0.0
    %v429 = vmax.f32 %v401, 0.0
    %v430 = vmax.f32 %v404, 0.0
    %v431 = vmax.f32 %v409, 0.0
    %v432 = vmax.f32 %v412, 0.0
    %v433 = vmax.f32 %v417, 0.0
    %v434 = vmax.f32 %v420, 0.0
    %v435 = vpack.c.bf16 %v424, %v423
    %v436 = vpack.c.bf16 %v426, %v425
    %v437 = vpack.c.bf16 %v428, %v427
    %v438 = vpack.c.bf16 %v430, %v429
    %v439 = vpack.c.bf16 %v432, %v431
    %v440 = vpack.c.bf16 %v434, %v433
    %v441 = vld [vmem:[#allocation8] sm:$0xf]
    %v442 = vld [vmem:[#allocation8 + $0x4] sm:$0xf]
    %v443 = vld [vmem:[#allocation8 + $0x8] sm:$0xf]
    %v444 = vld [vmem:[#allocation8 + $0xc] sm:$0xf]
    %v445 = vld [vmem:[#allocation8 + $0x10] sm:$0xf]
    %v446 = vld [vmem:[#allocation8 + $0x14] sm:$0xf]
    %v447 = vld [vmem:[#allocation8 + $0x18] sm:$0xf]
    %v448 = vld [vmem:[#allocation8 + $0x1c] sm:$0xf]
    %v449 = vld [vmem:[#allocation8 + $0x20] sm:$0xf]
    %v450 = vld [vmem:[#allocation8 + $0x24] sm:$0xf]
    %v451 = vld [vmem:[#allocation8 + $0x28] sm:$0xf]
    %v452 = vld [vmem:[#allocation8 + $0x2c] sm:$0xf]
    %v453 = vld [vmem:[#allocation8 + $0x30] sm:$0xf]
    %v454 = vld [vmem:[#allocation8 + $0x34] sm:$0xf]
    %v455 = vld [vmem:[#allocation8 + $0x38] sm:$0xf]
    %v456 = vld [vmem:[#allocation8 + $0x3c] sm:$0xf]
    %v457 = vld [vmem:[%s6] sm:$0x1]
    %v459 = vlaneseq
    %v460 = vshrl.u32 %v459, 7
    %v461 = vsub.s32 0, %v460
    %v462 = vrot.slane %v457, %v461
    %v480 = vunpack.c.l.b16 %v441
    %v481 = vunpack.c.l.b16 %v442
    %v482 = vunpack.c.l.b16 %v443
    %v483 = vunpack.c.l.b16 %v444
    %v484 = vunpack.c.l.b16 %v445
    %v485 = vunpack.c.l.b16 %v446
    %v486 = vunpack.c.l.b16 %v447
    %v487 = vunpack.c.l.b16 %v448
    %v488 = vunpack.c.l.b16 %v449
    %v489 = vunpack.c.l.b16 %v450
    %v490 = vunpack.c.l.b16 %v451
    %v491 = vunpack.c.l.b16 %v452
    %v492 = vunpack.c.l.b16 %v453
    %v493 = vunpack.c.l.b16 %v454
    %v494 = vunpack.c.l.b16 %v455
    %v495 = vunpack.c.l.b16 %v456
    %v496 = vpack.c.b16 %v481, %v480
    %v497 = vpack.c.b16 %v483, %v482
    %v498 = vpack.c.b16 %v485, %v484
    %v499 = vpack.c.b16 %v487, %v486
    %v500 = vpack.c.b16 %v489, %v488
    %v501 = vpack.c.b16 %v491, %v490
    %v502 = vpack.c.b16 %v493, %v492
    %v503 = vpack.c.b16 %v495, %v494
    %512 = vmatprep.subr.bf16.mxu0 0
    %513 = vmatpush1.bf16.msra.mxu0 %v503
    %514 = vmatprep.subr.bf16.mxu0 0
    %515 = vmatpush1.bf16.msra.mxu0 %v502
    %516 = vmatprep.subr.bf16.mxu0 0
    %517 = vmatpush1.bf16.msra.mxu0 %v501
    %518 = vmatprep.subr.bf16.mxu0 0
    %519 = vmatpush1.bf16.msra.mxu0 %v500
    %520 = vmatprep.subr.bf16.mxu0 0
    %521 = vmatpush1.bf16.msra.mxu0 %v499
    %522 = vmatprep.subr.bf16.mxu0 0
    %523 = vmatpush1.bf16.msra.mxu0 %v498
    %524 = vmatprep.subr.bf16.mxu0 0
    %525 = vmatpush1.bf16.msra.mxu0 %v497
    %526 = vmatprep.subr.bf16.mxu0 0
    %527 = vmatpush1.bf16.msra.mxu0 %v496
    %528 = vmatprep.subr.bf16.mxu0 0
    %529 = vmatpush2.bf16.msra.mxu0 0
    %530 = vmatprep.subr.bf16.mxu0 0
    %531 = vmatpush2.bf16.msra.mxu0 0
    %532 = vmatprep.subr.bf16.mxu0 0
    %533 = vmatpush2.bf16.msra.mxu0 0
    %534 = vmatprep.subr.bf16.mxu0 0
    %535 = vmatpush2.bf16.msra.mxu0 0
    %536 = vmatprep.subr.bf16.mxu0 0
    %537 = vmatpush2.bf16.msra.mxu0 0
    %538 = vmatprep.subr.bf16.mxu0 0
    %539 = vmatpush2.bf16.msra.mxu0 0
    %540 = vmatprep.subr.bf16.mxu0 0
    %541 = vmatpush2.bf16.msra.mxu0 0
    %542 = vmatprep.subr.bf16.mxu0 0
    %543 = vmatpush2.bf16.msra.mxu0 0
    %544 = vmatprep.mubr.bf16.mxu0 0
    %545 = vmatmul.mubr.bf16.gmra.mxu0 %v435
    %v546 = vpop.f32.mrf.mxu0
    %v547 = vadd.f32 %v462, %v546
    %v548 = vpop.f32.mrf.mxu0
    %v549 = vpop.f32.mrf.mxu0
    %v550 = vadd.f32 %v462, %v549
    %v551 = vpop.f32.mrf.mxu0
    %552 = vmatprep.mubr.bf16.mxu0 0
    %553 = vmatmul.mubr.bf16.gmra.mxu0 %v436
    %v554 = vpop.f32.mrf.mxu0
    %v555 = vadd.f32 %v462, %v554
    %v556 = vpop.f32.mrf.mxu0
    %v557 = vpop.f32.mrf.mxu0
    %v558 = vadd.f32 %v462, %v557
    %v559 = vpop.f32.mrf.mxu0
    %560 = vmatprep.mubr.bf16.mxu0 0
    %561 = vmatmul.mubr.bf16.gmra.mxu0 %v437
    %v562 = vpop.f32.mrf.mxu0
    %v563 = vadd.f32 %v462, %v562
    %v564 = vpop.f32.mrf.mxu0
    %v565 = vpop.f32.mrf.mxu0
    %v566 = vadd.f32 %v462, %v565
    %v567 = vpop.f32.mrf.mxu0
    %568 = vmatprep.mubr.bf16.mxu0 0
    %569 = vmatmul.mubr.bf16.gmra.mxu0 %v438
    %v570 = vpop.f32.mrf.mxu0
    %v571 = vadd.f32 %v462, %v570
    %v572 = vpop.f32.mrf.mxu0
    %v573 = vpop.f32.mrf.mxu0
    %v574 = vadd.f32 %v462, %v573
    %v575 = vpop.f32.mrf.mxu0
    %576 = vmatprep.mubr.bf16.mxu0 0
    %577 = vmatmul.mubr.bf16.gmra.mxu0 %v439
    %v578 = vpop.f32.mrf.mxu0
    %v579 = vadd.f32 %v462, %v578
    %v580 = vpop.f32.mrf.mxu0
    %v581 = vpop.f32.mrf.mxu0
    %v582 = vadd.f32 %v462, %v581
    %v583 = vpop.f32.mrf.mxu0
    %584 = vmatprep.mubr.bf16.mxu0 0
    %585 = vmatmul.mubr.bf16.gmra.mxu0 %v440
    %v586 = vpop.f32.mrf.mxu0
    %v587 = vadd.f32 %v462, %v586
    %v588 = vpop.f32.mrf.mxu0
    %v589 = vpop.f32.mrf.mxu0
    %v590 = vadd.f32 %v462, %v589
    %v591 = vpop.f32.mrf.mxu0
    %592 = vdwg.mxu0
    %v593 = vxor.u32 %v547, 2147483648
    %v594 = vxor.u32 %v550, 2147483648
    %v595 = vxor.u32 %v555, 2147483648
    %v596 = vxor.u32 %v558, 2147483648
    %v597 = vxor.u32 %v563, 2147483648
    %v598 = vxor.u32 %v566, 2147483648
    %v599 = vxor.u32 %v571, 2147483648
    %v600 = vxor.u32 %v574, 2147483648
    %v601 = vxor.u32 %v579, 2147483648
    %v602 = vxor.u32 %v582, 2147483648
    %v603 = vxor.u32 %v587, 2147483648
    %v604 = vxor.u32 %v590, 2147483648
    %v605 = vmul.f32 %v593, 1.442695
    %v606 = vpow.pop %v605
    %v607 = vmul.f32 %v594, 1.442695
    %v608 = vpow.pop %v607
    %v609 = vmul.f32 %v595, 1.442695
    %v610 = vpow.pop %v609
    %v611 = vmul.f32 %v596, 1.442695
    %v612 = vpow.pop %v611
    %v613 = vmul.f32 %v597, 1.442695
    %v614 = vpow.pop %v613
    %v615 = vmul.f32 %v598, 1.442695
    %v616 = vpow.pop %v615
    %v617 = vmul.f32 %v599, 1.442695
    %v618 = vpow.pop %v617
    %v619 = vmul.f32 %v600, 1.442695
    %v620 = vpow.pop %v619
    %v621 = vmul.f32 %v601, 1.442695
    %v622 = vpow.pop %v621
    %v623 = vmul.f32 %v602, 1.442695
    %v624 = vpow.pop %v623
    %v625 = vmul.f32 %v603, 1.442695
    %v626 = vpow.pop %v625
    %v627 = vmul.f32 %v604, 1.442695
    %v628 = vpow.pop %v627
    %v629 = vadd.f32 %v606, 1.0
    %v630 = vadd.f32 %v608, 1.0
    %v631 = vadd.f32 %v610, 1.0
    %v632 = vadd.f32 %v612, 1.0
    %v633 = vadd.f32 %v614, 1.0
    %v634 = vadd.f32 %v616, 1.0
    %v635 = vadd.f32 %v618, 1.0
    %v636 = vadd.f32 %v620, 1.0
    %v637 = vadd.f32 %v622, 1.0
    %v638 = vadd.f32 %v624, 1.0
    %v639 = vadd.f32 %v626, 1.0
    %v640 = vadd.f32 %v628, 1.0
    %v641 = vrcp.pop %v629
    %v642 = vmul.f32 1.0, %v641
    %v643 = vrcp.pop %v630
    %v644 = vmul.f32 1.0, %v643
    %v645 = vrcp.pop %v631
    %v646 = vmul.f32 1.0, %v645
    %v647 = vrcp.pop %v632
    %v648 = vmul.f32 1.0, %v647
    %v649 = vrcp.pop %v633
    %v650 = vmul.f32 1.0, %v649
    %v651 = vrcp.pop %v634
    %v652 = vmul.f32 1.0, %v651
    %v653 = vrcp.pop %v635
    %v654 = vmul.f32 1.0, %v653
    %v655 = vrcp.pop %v636
    %v656 = vmul.f32 1.0, %v655
    %v657 = vrcp.pop %v637
    %v658 = vmul.f32 1.0, %v657
    %v659 = vrcp.pop %v638
    %v660 = vmul.f32 1.0, %v659
    %v661 = vrcp.pop %v639
    %v662 = vmul.f32 1.0, %v661
    %v663 = vrcp.pop %v640
    %v664 = vmul.f32 1.0, %v663
    %665 = vst [vmem:[#allocation10] sm:$0xff] %v642
    %666 = vst [vmem:[#allocation10 + $0x8] sm:$0xff] %v644
    %667 = vst [vmem:[#allocation10 + $0x10] sm:$0xff] %v646
    %668 = vst [vmem:[#allocation10 + $0x18] sm:$0xff] %v648
    %669 = vst [vmem:[#allocation10 + $0x20] sm:$0xff] %v650
    %670 = vst [vmem:[#allocation10 + $0x28] sm:$0xff] %v652
    %671 = vst [vmem:[#allocation10 + $0x30] sm:$0xff] %v654
    %672 = vst [vmem:[#allocation10 + $0x38] sm:$0xff] %v656
    %673 = vst [vmem:[#allocation10 + $0x40] sm:$0xff] %v658
    %674 = vst [vmem:[#allocation10 + $0x48] sm:$0xff] %v660
    %675 = vst [vmem:[#allocation10 + $0x50] sm:$0xff] %v662
    %676 = vst [vmem:[#allocation10 + $0x58] sm:$0xff] %v664
    // Predicated region
    $region46: #{tpu_custom_call.1} parent=1 // pred_check
      _
    $region47: #{tpu_custom_call.1} parent=1 // pred_check_branch
      %678 = sbr.rel (0) target = $region49
    $region48: #{tpu_custom_call.1} parent=1 // pred_region
      %s680 = ssub.s32 1536, 1536
      %681 = vsyncadd [#allocation4], %s680
      %s682 = sshll.u32 [#allocation10], 4
      %s683 = int_to_ptr.vmem [resolvable:$true] %s682
      %688 = dma.vmem_to_hbm [thread:$0]  %s683, 1536, %s7, [#allocation4], 128, 128, 8
    $region49: #{tpu_custom_call.1} parent=1 // pred_fallthru
      _
    // Predicated region
    $region50: #{tpu_custom_call.1} parent=1 // pred_check
      _
    $region51: #{tpu_custom_call.1} parent=1 // pred_check_branch
      %690 = sbr.rel (0) target = $region53
    $region52: #{tpu_custom_call.1} parent=1 // pred_region
      %691 = dma.done [#allocation4], 1536
    $region53: #{tpu_custom_call.1} parent=1 // pred_fallthru
      _
    %692 = vsyncpa [#allocation3], 1
    %693 = vsyncpa [#allocation6], 1
    %694 = vsyncpa [#allocation9], 1
    %695 = vsyncpa [#allocation4], 1

</llo_original>
